<compile_context>
chip_gen: v5e
topology: v5e:2x2
jax: 0.10.0
libtpu: 0.0.40
codegen_flags: <defaults>
</compile_context>

<pallas_src>
import numpy as np
import jax
import jax.numpy as jnp
from jax.experimental import pallas as pl
from jax.experimental.pallas import tpu as pltpu


def _round_up(x, m):
    return ((x + m - 1) // m) * m


def _shape_layer_kernel(params_ref, comp_ref, out_ref):
    # out[b, n] = sum_k params_aug[b, k] * comp_aug[k, n]
    # (mean folded in as the last row of comp_aug, matched by a ones column in params_aug)
    out_ref[...] = jnp.dot(
        params_ref[...], comp_ref[...],
        preferred_element_type=jnp.float32,
    ).astype(out_ref.dtype)


def prepare_shape_layer(shape_mean, shape_components):
    """Hoisted, call-once preprocessing of the constant buffers.

    shape_mean:        (1, P, D)    float32
    shape_components:  (1, C, P, D) float32
    returns: comp_aug (C+1, P*D) float32  — components with the mean stacked as the last row.
    """
    _, C, P, D = shape_components.shape
    N = P * D
    comp_2d = jnp.asarray(shape_components).reshape(C, N).astype(jnp.float32)
    mean_2d = jnp.asarray(shape_mean).reshape(1, N).astype(jnp.float32)
    return jnp.concatenate([comp_2d, mean_2d], axis=0)          # (C+1, N)


def shape_layer_forward(shape_params, comp_aug, out_spatial,
                        *, tile_n=2048, tile_b=512, out_dtype=jnp.float32):
    """
    shape_params: (B, C, 1, 1) float32   (as in the PyTorch call convention)
    comp_aug:     (C+1, P*D)   float32   (from prepare_shape_layer, constant across calls)
    out_spatial:  (P, D)
    returns:      (B, P, D)    out_dtype
    """
    B = shape_params.shape[0]
    K, N = comp_aug.shape                 # K = C + 1
    C = K - 1
    P, D = out_spatial
    assert P * D == N

    params_2d = shape_params.reshape(B, C).astype(jnp.float32)
    params_aug = jnp.concatenate(
        [params_2d, jnp.ones((B, 1), jnp.float32)], axis=1)     # (B, C+1) — tiny, per call

    # Tile sizes: lane-dense columns (multiple of 128), sublane-aligned rows (multiple of 8),
    # clamped so tiles never exceed the (rounded-up) problem size.
    TN = min(_round_up(N, 128), _round_up(tile_n, 128))
    TB = min(_round_up(B, 8), _round_up(tile_b, 8))

    n_tiles = pl.cdiv(N, TN)
    b_tiles = pl.cdiv(B, TB)

    out = pl.pallas_call(
        _shape_layer_kernel,
        out_shape=jax.ShapeDtypeStruct((B, N), out_dtype),
        # N-tile axis outer, B-tile axis inner (fastest): the components tile's block index is
        # constant across the inner loop, so Pallas skips re-DMA and each components column
        # tile is read from HBM exactly once.
        grid=(n_tiles, b_tiles),
        in_specs=[
            pl.BlockSpec((TB, K), lambda jn, ib: (ib, 0)),   # params_aug tile (full K)
            pl.BlockSpec((K, TN), lambda jn, ib: (0, jn)),   # comp_aug column tile (full K)
        ],
        out_specs=pl.BlockSpec((TB, TN), lambda jn, ib: (ib, jn)),
        compiler_params=pltpu.CompilerParams(
            dimension_semantics=("parallel", "parallel"),
            vmem_limit_bytes=48 * 1024 * 1024,
        ),
    )(params_aug, comp_aug)

    return out.reshape(B, P, D)


if __name__ == "__main__":
    # Small, deterministic setup consistent with the module:
    #   shapes ndarray of shape (C+1, P, D) with C=4 components, P=16 landmarks, D=2 coords
    key = jax.random.PRNGKey(0)
    k_shapes, k_params = jax.random.split(key)

    C, P, D, B = 4, 16, 2, 2
    shapes_np = np.asarray(
        jax.random.normal(k_shapes, (C + 1, P, D), dtype=jnp.float32))

    # Buffers as the PyTorch module would register them.
    shape_mean = jnp.asarray(shapes_np[0])[None, ...]          # (1, P, D)
    shape_components = jnp.asarray(shapes_np[1:])[None, ...]   # (1, C, P, D)

    # Hoisted constant-buffer prep (done once at "module init").
    comp_aug = jax.block_until_ready(
        prepare_shape_layer(shape_mean, shape_components))     # (C+1, P*D)

    # shape_params as produced upstream in shapenet: (B, C, 1, 1)
    shape_params = jax.random.normal(k_params, (B, C, 1, 1), dtype=jnp.float32)

    out = shape_layer_forward(shape_params, comp_aug, (P, D))
    out = jax.block_until_ready(out)

    # Pure-JAX reference (mirrors the PyTorch python implementation).
    ref = shape_mean + jnp.sum(
        shape_components * shape_params.reshape(B, C, 1, 1), axis=1)
    np.testing.assert_allclose(np.asarray(out), np.asarray(ref),
                               rtol=1e-5, atol=1e-5)

    print("KERNEL_OK")
</pallas_src>

<mosaic_0001>
module attributes {stable_mosaic.version = 11 : i64} {
  func.func @_shape_layer_kernel(%arg0: i32, %arg1: i32, %arg2: memref<8x5xf32, #tpu.memory_space<vmem>>, %arg3: memref<5x128xf32, #tpu.memory_space<vmem>>, %arg4: memref<8x128xf32, #tpu.memory_space<vmem>>) attributes {dimension_semantics = [#tpu.dimension_semantics<parallel>, #tpu.dimension_semantics<parallel>], iteration_bounds = array<i64: 1, 1>, scalar_prefetch = 0 : i64, scratch_operands = 0 : i64, tpu.core_type = #tpu.core_type<tc>, window_params = [{transform_indices = @transform_0, window_bounds = array<i64: 8, 5>}, {transform_indices = @transform_1, window_bounds = array<i64: 5, 128>}, {transform_indices = @transform_2, window_bounds = array<i64: 8, 128>}]} {
    %c0 = arith.constant 0 : index
    %c0_0 = arith.constant 0 : index
    %0 = vector.load %arg2[%c0, %c0_0] : memref<8x5xf32, #tpu.memory_space<vmem>>, vector<8x5xf32>
    %c0_1 = arith.constant 0 : index
    %c0_2 = arith.constant 0 : index
    %1 = vector.load %arg3[%c0_1, %c0_2] : memref<5x128xf32, #tpu.memory_space<vmem>>, vector<5x128xf32>
    %cst = arith.constant dense<0.000000e+00> : vector<8x128xf32>
    %2 = tpu.matmul %0, %1, %cst {dimension_numbers = #tpu.dot_dimension_numbers<[1], [0], [0], [1], [0, 0, 1, 1], [], []>} : vector<8x5xf32>, vector<5x128xf32>, vector<8x128xf32> -> vector<8x128xf32>
    %c0_3 = arith.constant 0 : index
    %c0_4 = arith.constant 0 : index
    %3 = vector.load %arg4[%c0_3, %c0_4] : memref<8x128xf32, #tpu.memory_space<vmem>>, vector<8x128xf32>
    tpu.vector_store %arg4[%c0_3, %c0_4], %2 {strides = array<i32>} : memref<8x128xf32, #tpu.memory_space<vmem>>, vector<8x128xf32>,
    return
  }
  func.func @transform_0(%arg0: i32, %arg1: i32) -> (i32, i32) {
    %c0_i32 = arith.constant 0 : i32
    %c0_i32_0 = arith.constant 0 : i32
    return %arg1, %c0_i32 : i32, i32
  }
  func.func @transform_1(%arg0: i32, %arg1: i32) -> (i32, i32) {
    %c0_i32 = arith.constant 0 : i32
    %c0_i32_0 = arith.constant 0 : i32
    return %c0_i32, %arg0 : i32, i32
  }
  func.func @transform_2(%arg0: i32, %arg1: i32) -> (i32, i32) {
    %c0_i32 = arith.constant 0 : i32
    return %arg1, %arg0 : i32, i32
  }
}

</mosaic_0001>

<llo_original>
// kernel: tpu_custom_call.1
$region0: #{tpu_custom_call.1}
  #allocation0 [shape = 'u32[]', space=smem, size = 0x4, offset = 0x4, fixed_abs, tag = 'smem constant byte address 0x4 - core index']
  #allocation1 [shape = 'u32[72,128]{1,0:T(1,128)}', space=vmem, size = 0x9000, scoped, tag = 'internal scratch']
  %s0 = inlined_call_operand.hbm [shape: f32[2,5], index: 0, kind: input, shape index: {}]
  %s1 = inlined_call_operand.hbm [shape: f32[5,32], index: 1, kind: input, shape index: {}]
  %s2 = inlined_call_operand.hbm [shape: f32[2,32], index: 2, kind: output, shape index: {}]
  %s3 = sld [smem:[#allocation0]]
  $region26: #{tpu_custom_call.1} parent=0
    _
  %s5 = ssub.s32 1, %s3
  %s6 = scalar_select 0, %s5, %s3
  $region1: #{tpu_custom_call.1} parent=0
    #allocation2 [shape = 'u8[4096]{0}', space=vmem, size = 0x1000, scoped, tag = 'input window, operand 0, single buffered']
    #allocation3 [shape = 's32[1]{0}', space=sflag, size = 0x4, scoped, tag = 'scoped memory for tpu_custom_call.1']
    #allocation4 [shape = 's32[1]{0}', space=sflag, size = 0x4, scoped, tag = 'scoped memory for tpu_custom_call.1']
    #allocation5 [shape = 'u8[4096]{0}', space=vmem, size = 0x1000, scoped, tag = 'input window, operand 1, single buffered']
    #allocation6 [shape = 's32[1]{0}', space=sflag, size = 0x4, scoped, tag = 'scoped memory for tpu_custom_call.1']
    #allocation7 [shape = 'u8[4096]{0}', space=vmem, size = 0x1000, scoped, tag = 'output window, operand 0, single buffered']
    %7 = vsyncpa [#allocation3], 0
    %8 = vsyncpa [#allocation6], 0
    %9 = vsyncpa [#allocation4], 0
    // Predicated region
    $region2: #{tpu_custom_call.1} parent=1 // pred_check
      _
    $region3: #{tpu_custom_call.1} parent=1 // pred_check_branch
      %11 = sbr.rel (0) target = $region5
    $region4: #{tpu_custom_call.1} parent=1 // pred_region
      %13 = vsyncadd [#allocation3], 96
      %s14 = sshll.u32 %s0, 4
      %s15 = int_to_ptr.hbm [resolvable:$true] %s14
      %s16 = sshll.u32 [#allocation2], 4
      %s17 = int_to_ptr.vmem [resolvable:$true] %s16
      %22 = dma.hbm_to_vmem [thread:$0]  %s15, 32, %s17, [#allocation3], 32, 32, 2
    $region5: #{tpu_custom_call.1} parent=1 // pred_fallthru
      _
    // Predicated region
    $region6: #{tpu_custom_call.1} parent=1 // pred_check
      _
    $region7: #{tpu_custom_call.1} parent=1 // pred_check_branch
      %24 = sbr.rel (0) target = $region9
    $region8: #{tpu_custom_call.1} parent=1 // pred_region
      %26 = vsyncadd [#allocation6], 0
      %s28 = sshll.u32 %s1, 4
      %s29 = int_to_ptr.hbm [resolvable:$true] %s28
      %s30 = sshll.u32 [#allocation5], 4
      %s31 = int_to_ptr.vmem [resolvable:$true] %s30
      %33 = dma.hbm_to_vmem [thread:$0]  %s29, 128, %s31, [#allocation6]
    $region9: #{tpu_custom_call.1} parent=1 // pred_fallthru
      _
    // Predicated region
    $region10: #{tpu_custom_call.1} parent=1 // pred_check
      _
    $region11: #{tpu_custom_call.1} parent=1 // pred_check_branch
      %35 = sbr.rel (0) target = $region13
    $region12: #{tpu_custom_call.1} parent=1 // pred_region
      %37 = dma.done [#allocation3], 128
    $region13: #{tpu_custom_call.1} parent=1 // pred_fallthru
      _
    // Predicated region
    $region14: #{tpu_custom_call.1} parent=1 // pred_check
      _
    $region15: #{tpu_custom_call.1} parent=1 // pred_check_branch
      %39 = sbr.rel (0) target = $region17
    $region16: #{tpu_custom_call.1} parent=1 // pred_region
      %41 = dma.done [#allocation6], 128
    $region17: #{tpu_custom_call.1} parent=1 // pred_fallthru
      _
    %v42 = vld [vmem:[#allocation2] sm:$0xff]
    %v43 = vld [vmem:[#allocation5] sm:$0x1f]
    %vm44 = vcmask 39936
    %v46 = vsel %vm44, %v42, 0
    %vm48 = vcmask 1044480
    %v50 = vsel %vm48, %v43, 0
    %52 = vmatpush.msra.mxu0 0.0
    %53 = vmatpush.msra.mxu0 0.0
    %54 = vmatpush.msra.mxu0 0.0
    %55 = vmatpush.msra.mxu0 0.0
    %56 = vmatpush.msra.mxu0 0.0
    %57 = vmatpush.msra.mxu0 0.0
    %58 = vmatpush.msra.mxu0 0.0
    %59 = vmatpush.msra.mxu0 0.0
    %60 = vmatpush.msra.mxu0 0.0
    %61 = vmatpush.msra.mxu0 0.0
    %62 = vmatpush.msra.mxu0 0.0
    %63 = vmatpush.msra.mxu0 0.0
    %64 = vmatpush.msra.mxu0 0.0
    %65 = vmatpush.msra.mxu0 0.0
    %66 = vmatpush.msra.mxu0 0.0
    %67 = vmatpush.msra.mxu0 %v50
    %68 = vmatmul.f32.gmra.mxu0 %v46
    %v69 = vpop.f32.mrf.mxu0
    %v70 = vadd.f32 0.0, %v69
    %71 = vdwg.mxu0
    %72 = vst [vmem:[#allocation7] sm:$0xff] %v70
    // Predicated region
    $region18: #{tpu_custom_call.1} parent=1 // pred_check
      _
    $region19: #{tpu_custom_call.1} parent=1 // pred_check_branch
      %74 = sbr.rel (0) target = $region21
    $region20: #{tpu_custom_call.1} parent=1 // pred_region
      %76 = vsyncadd [#allocation4], 96
      %s77 = sshll.u32 [#allocation7], 4
      %s78 = int_to_ptr.vmem [resolvable:$true] %s77
      %s79 = sshll.u32 %s2, 4
      %s80 = int_to_ptr.hbm [resolvable:$true] %s79
      %85 = dma.vmem_to_hbm [thread:$0]  %s78, 32, %s80, [#allocation4], 32, 32, 2
    $region21: #{tpu_custom_call.1} parent=1 // pred_fallthru
      _
    // Predicated region
    $region22: #{tpu_custom_call.1} parent=1 // pred_check
      _
    $region23: #{tpu_custom_call.1} parent=1 // pred_check_branch
      %87 = sbr.rel (0) target = $region25
    $region24: #{tpu_custom_call.1} parent=1 // pred_region
      %89 = dma.done [#allocation4], 128
    $region25: #{tpu_custom_call.1} parent=1 // pred_fallthru
      _
    %90 = vsyncpa [#allocation3], 1
    %91 = vsyncpa [#allocation6], 1
    %92 = vsyncpa [#allocation4], 1

</llo_original>
